<compile_context>
chip_gen: v7x
topology: tpu7x:2x2x1
jax: 0.10.0
libtpu: 0.0.40
codegen_flags: <defaults>
</compile_context>

<pallas_src>
import jax
import jax.numpy as jnp
from jax.experimental import pallas as pl
from jax.experimental.pallas import tpu as pltpu

NUM_HIDDEN_LAYERS = 5


def _round_up(v, m):
    return ((v + m - 1) // m) * m


def _make_kernel(num_hidden_layers, e_pad_cols, compute_dtype):
    def kernel(x_ref, e_ref, w0_ref, b0_ref, wfull_ref, bh_ref, wf_ref, bf_ref,
               out_ref):
        cdt = compute_dtype

        # Streamed tiles are unpadded in HBM; cast / zero-pad only in VMEM.
        x = x_ref[...].astype(cdt)                    # [TB, input_size]
        e = e_ref[...].astype(cdt)                    # [TB, e_size]
        if e_pad_cols:
            e = jnp.concatenate(
                [e, jnp.zeros((e.shape[0], e_pad_cols), cdt)], axis=-1)

        # Layer 0: Linear(input -> hidden) + ReLU (f32 accumulation on MXU).
        h = jnp.dot(x, w0_ref[...], preferred_element_type=jnp.float32)
        h = jnp.maximum(h + b0_ref[...], 0.0)

        # Hidden layers: relu(concat([h, e]) @ Wfull_i + b_i) — ONE fused
        # k = H + E contraction per layer (no hoisted wide e-matmul).
        for i in range(num_hidden_layers):            # small fixed trip: unroll
            hcat = jnp.concatenate([h.astype(cdt), e], axis=-1)
            z = jnp.dot(hcat, wfull_ref[i], preferred_element_type=jnp.float32)
            h = jnp.maximum(z + bh_ref[i], 0.0)

        # Output layer (no activation), unpadded output width.
        hcat = jnp.concatenate([h.astype(cdt), e], axis=-1)
        out = jnp.dot(hcat, wf_ref[...], preferred_element_type=jnp.float32)
        out_ref[...] = (out + bf_ref[...]).astype(out_ref.dtype)

    return kernel


def pack_params(params, compute_dtype=jnp.bfloat16):
    """One-time weight packing (pad / fuse / cast) — NOT in the per-call path.

    Layout:
      w0    : [input_size, H]      bf16   (H = hidden padded to 128)
      b0    : [1, H]               f32
      wfull : [L, H + E, H]        bf16   rows [0:hidden] = Wh_i,
                                          rows [H:H+e_size] = We_i, rest zero
      bh    : [L, 1, H]            f32
      wf    : [H + E, output_size] bf16   (output kept unpadded)
      bf    : [1, output_size]     f32
    """
    f32 = jnp.float32
    input_size, hidden = params["w0"].shape
    L, e_size, _ = params["we"].shape
    output_size = params["bf"].shape[-1]

    H = _round_up(hidden, 128)       # lane-dense hidden width for the MXU
    E = _round_up(e_size, 16)        # bf16 sublane quantum is enough for e
    HE = H + E

    def pad2(a, r, c):
        return jnp.pad(a, ((0, r - a.shape[0]), (0, c - a.shape[1])))

    w0 = pad2(params["w0"], input_size, H).astype(compute_dtype)
    b0 = pad2(params["b0"], 1, H).astype(f32)

    wfull = jnp.zeros((L, HE, H), f32)
    wfull = wfull.at[:, :hidden, :hidden].set(params["wh"])
    wfull = wfull.at[:, H:H + e_size, :hidden].set(params["we"])
    wfull = wfull.astype(compute_dtype)

    bh = jnp.zeros((L, 1, H), f32).at[:, :, :hidden].set(params["bh"])

    wf = jnp.zeros((HE, output_size), f32)
    wf = wf.at[:hidden, :].set(params["wfh"])
    wf = wf.at[H:H + e_size, :].set(params["wfe"])
    wf = wf.astype(compute_dtype)

    bf = params["bf"].astype(f32)

    return dict(w0=w0, b0=b0, wfull=wfull, bh=bh, wf=wf, bf=bf)


def custom_embedding_out_forward(x, e, packed, *, block_b=256):
    """x: [B, input_size] f32, e: [B, e_size] f32 -> [B, output_size] f32."""
    B, input_size = x.shape
    e_size = e.shape[1]
    w0, b0, wfull, bh, wf, bf = (packed[k]
                                 for k in ("w0", "b0", "wfull", "bh", "wf", "bf"))
    L, HE, H = wfull.shape
    E = HE - H
    output_size = wf.shape[1]
    assert w0.shape[0] == input_size and e_size <= E

    # Batch tile: multiple of 16 (bf16 sublane quantum); single tile for small B.
    TB = max(16, _round_up(min(block_b, _round_up(B, 16)), 16))
    Bp = _round_up(B, TB)
    if Bp != B:
        x = jnp.pad(x, ((0, Bp - B), (0, 0)))
        e = jnp.pad(e, ((0, Bp - B), (0, 0)))

    grid = (Bp // TB,)
    const2 = lambda i: (0, 0)
    const3 = lambda i: (0, 0, 0)
    in_specs = [
        pl.BlockSpec((TB, input_size), lambda i: (i, 0)),   # x tile (unpadded)
        pl.BlockSpec((TB, e_size), lambda i: (i, 0)),       # e tile (unpadded)
        pl.BlockSpec(w0.shape, const2),                     # weights: resident
        pl.BlockSpec(b0.shape, const2),
        pl.BlockSpec(wfull.shape, const3),
        pl.BlockSpec(bh.shape, const3),
        pl.BlockSpec(wf.shape, const2),
        pl.BlockSpec(bf.shape, const2),
    ]
    out_specs = pl.BlockSpec((TB, output_size), lambda i: (i, 0))

    bpe = jnp.dtype(w0.dtype).itemsize
    weight_bytes = ((w0.size + wfull.size + wf.size) * bpe
                    + (b0.size + bh.size + bf.size) * 4)
    tile_bytes = TB * (input_size + e_size + output_size) * 4
    # constants (default double-buffered) + double-buffered tiles + headroom.
    vmem_limit = int(min(64 << 20, 2 * weight_bytes + 4 * tile_bytes + (8 << 20)))

    flops = 2 * Bp * (input_size * H + L * HE * H + HE * output_size)
    bytes_accessed = int(weight_bytes
                         + Bp * (input_size + e_size + output_size) * 4)

    out = pl.pallas_call(
        _make_kernel(L, E - e_size, w0.dtype),
        out_shape=jax.ShapeDtypeStruct((Bp, output_size), jnp.float32),
        grid=grid,
        in_specs=in_specs,
        out_specs=out_specs,
        compiler_params=pltpu.CompilerParams(
            dimension_semantics=("parallel",),
            vmem_limit_bytes=vmem_limit),
        cost_estimate=pl.CostEstimate(flops=int(flops), transcendentals=0,
                                      bytes_accessed=bytes_accessed),
    )(x, e, w0, b0, wfull, bh, wf, bf)

    return out[:B] if Bp != B else out


def init_params(key, input_size, hidden_size, output_size, e_size):
    """Deterministic PyTorch-style uniform(-1/sqrt(fan_in), 1/sqrt(fan_in)) init."""
    def linear(k, fan_in, fan_out):
        kw, kb = jax.random.split(k)
        bound = 1.0 / jnp.sqrt(fan_in)
        w = jax.random.uniform(kw, (fan_in, fan_out), jnp.float32, -bound, bound)
        b = jax.random.uniform(kb, (1, fan_out), jnp.float32, -bound, bound)
        return w, b

    keys = jax.random.split(key, NUM_HIDDEN_LAYERS + 2)
    w0, b0 = linear(keys[0], input_size, hidden_size)

    wh_list, we_list, bh_list = [], [], []
    for i in range(NUM_HIDDEN_LAYERS):
        w, b = linear(keys[1 + i], hidden_size + e_size, hidden_size)
        wh_list.append(w[:hidden_size, :])      # contribution from h
        we_list.append(w[hidden_size:, :])      # contribution from e
        bh_list.append(b)
    wh = jnp.stack(wh_list)                     # [L, hidden, hidden]
    we = jnp.stack(we_list)                     # [L, e_size, hidden]
    bh = jnp.stack(bh_list)                     # [L, 1, hidden]

    wf, bf = linear(keys[-1], hidden_size + e_size, output_size)
    wfh = wf[:hidden_size, :]                   # [hidden, output]
    wfe = wf[hidden_size:, :]                   # [e_size, output]

    return dict(w0=w0, b0=b0, wh=wh, we=we, bh=bh, wfh=wfh, wfe=wfe, bf=bf)


def reference_forward_f32(x, e, params):
    """Pure-JAX f32 reference mirroring the PyTorch forward (explicit concat)."""
    hp = jax.lax.Precision.HIGHEST
    h = jnp.maximum(jnp.dot(x, params["w0"], precision=hp) + params["b0"], 0.0)
    for i in range(NUM_HIDDEN_LAYERS):
        hcat = jnp.concatenate([h, e], axis=1)
        w_full = jnp.concatenate([params["wh"][i], params["we"][i]], axis=0)
        h = jnp.maximum(jnp.dot(hcat, w_full, precision=hp) + params["bh"][i], 0.0)
    hcat = jnp.concatenate([h, e], axis=1)
    w_full = jnp.concatenate([params["wfh"], params["wfe"]], axis=0)
    return jnp.dot(hcat, w_full, precision=hp) + params["bf"]


def reference_forward_bf16(x, e, params):
    """Reference emulating the kernel's bf16-matmul / f32-accumulate numerics."""
    bf = jnp.bfloat16

    def mm(a, w):
        return jnp.dot(a.astype(bf), w.astype(bf),
                       preferred_element_type=jnp.float32)

    h = jnp.maximum(mm(x, params["w0"]) + params["b0"], 0.0)
    for i in range(NUM_HIDDEN_LAYERS):
        hcat = jnp.concatenate([h, e], axis=1)
        w_full = jnp.concatenate([params["wh"][i], params["we"][i]], axis=0)
        h = jnp.maximum(mm(hcat, w_full) + params["bh"][i], 0.0)
    hcat = jnp.concatenate([h, e], axis=1)
    w_full = jnp.concatenate([params["wfh"], params["wfe"]], axis=0)
    return mm(hcat, w_full) + params["bf"]


if __name__ == "__main__":
    # Small synthetic shapes consistent with the module's forward.
    B, input_size, hidden_size, output_size, e_size = 48, 32, 32, 16, 8

    key = jax.random.PRNGKey(0)
    kx, ke, kp = jax.random.split(key, 3)
    x = jax.random.normal(kx, (B, input_size), jnp.float32)
    e = jax.random.normal(ke, (B, e_size), jnp.float32)
    params = init_params(kp, input_size, hidden_size, output_size, e_size)

    packed = pack_params(params)        # one-time packing, outside forward path

    # block_b=16 -> grid of 3 batch tiles (exercises pipelining + 'parallel').
    out = custom_embedding_out_forward(x, e, packed, block_b=16)
    out = jax.block_until_ready(out)
    assert out.shape == (B, output_size)

    # Tight check vs. a reference using the same bf16-matmul numerics.
    ref_bf16 = reference_forward_bf16(x, e, params)
    assert jnp.allclose(out, ref_bf16, atol=1e-3, rtol=1e-3), \
        "mismatch vs bf16-emulating reference"

    # Loose check vs. the full-f32 PyTorch-mirroring reference.
    ref_f32 = reference_forward_f32(x, e, params)
    assert jnp.allclose(out, ref_f32, atol=5e-2, rtol=5e-2), \
        "mismatch vs f32 reference"

    print("KERNEL_OK")
</pallas_src>

<mosaic_0001>
module attributes {stable_mosaic.version = 11 : i64} {
  func.func @kernel(%arg0: i32, %arg1: memref<16x32xf32, #tpu.memory_space<vmem>>, %arg2: memref<16x8xf32, #tpu.memory_space<vmem>>, %arg3: memref<32x128xbf16, #tpu.memory_space<vmem>>, %arg4: memref<1x128xf32, #tpu.memory_space<vmem>>, %arg5: memref<5x144x128xbf16, #tpu.memory_space<vmem>>, %arg6: memref<5x1x128xf32, #tpu.memory_space<vmem>>, %arg7: memref<144x16xbf16, #tpu.memory_space<vmem>>, %arg8: memref<1x16xf32, #tpu.memory_space<vmem>>, %arg9: memref<16x16xf32, #tpu.memory_space<vmem>>) attributes {dimension_semantics = [#tpu.dimension_semantics<parallel>], iteration_bounds = array<i64: 3>, scalar_prefetch = 0 : i64, scratch_operands = 0 : i64, tpu.core_type = #tpu.core_type<tc>, window_params = [{transform_indices = @transform_0, window_bounds = array<i64: 16, 32>}, {transform_indices = @transform_1, window_bounds = array<i64: 16, 8>}, {pipeline_mode = #tpu.pipeline_mode<synchronous>, transform_indices = @transform_2, window_bounds = array<i64: 32, 128>}, {pipeline_mode = #tpu.pipeline_mode<synchronous>, transform_indices = @transform_3, window_bounds = array<i64: 1, 128>}, {pipeline_mode = #tpu.pipeline_mode<synchronous>, transform_indices = @transform_4, window_bounds = array<i64: 5, 144, 128>}, {pipeline_mode = #tpu.pipeline_mode<synchronous>, transform_indices = @transform_5, window_bounds = array<i64: 5, 1, 128>}, {pipeline_mode = #tpu.pipeline_mode<synchronous>, transform_indices = @transform_6, window_bounds = array<i64: 144, 16>}, {pipeline_mode = #tpu.pipeline_mode<synchronous>, transform_indices = @transform_7, window_bounds = array<i64: 1, 16>}, {transform_indices = @transform_8, window_bounds = array<i64: 16, 16>}]} {
    %c0 = arith.constant 0 : index
    %c0_0 = arith.constant 0 : index
    %0 = vector.load %arg1[%c0, %c0_0] : memref<16x32xf32, #tpu.memory_space<vmem>>, vector<16x32xf32>
    %1 = arith.truncf %0 : vector<16x32xf32> to vector<16x32xbf16>
    %c0_1 = arith.constant 0 : index
    %c0_2 = arith.constant 0 : index
    %2 = vector.load %arg2[%c0_1, %c0_2] : memref<16x8xf32, #tpu.memory_space<vmem>>, vector<16x8xf32>
    %3 = arith.truncf %2 : vector<16x8xf32> to vector<16x8xbf16>
    %cst = arith.constant 0.000000e+00 : bf16
    %4 = vector.broadcast %cst : bf16 to vector<16x8xbf16>
    %5 = tpu.concatenate %3, %4 in 1 : vector<16x8xbf16>, vector<16x8xbf16> -> vector<16x16xbf16>
    %c0_3 = arith.constant 0 : index
    %c0_4 = arith.constant 0 : index
    %6 = vector.load %arg3[%c0_3, %c0_4] : memref<32x128xbf16, #tpu.memory_space<vmem>>, vector<32x128xbf16>
    %cst_5 = arith.constant dense<0.000000e+00> : vector<16x128xf32>
    %7 = tpu.matmul %1, %6, %cst_5 {dimension_numbers = #tpu.dot_dimension_numbers<[1], [0], [0], [1], [0, 0, 1, 1], [], []>} : vector<16x32xbf16>, vector<32x128xbf16>, vector<16x128xf32> -> vector<16x128xf32>
    %c0_6 = arith.constant 0 : index
    %c0_7 = arith.constant 0 : index
    %8 = vector.load %arg4[%c0_6, %c0_7] : memref<1x128xf32, #tpu.memory_space<vmem>>, vector<1x128xf32>
    %9 = vector.broadcast %8 : vector<1x128xf32> to vector<16x128xf32>
    %10 = arith.addf %7, %9 : vector<16x128xf32>
    %cst_8 = arith.constant 0.000000e+00 : f32
    %11 = vector.broadcast %cst_8 : f32 to vector<16x128xf32>
    %12 = arith.maximumf %10, %11 : vector<16x128xf32>
    %13 = arith.truncf %12 : vector<16x128xf32> to vector<16x128xbf16>
    %14 = tpu.concatenate %13, %5 in 1 : vector<16x128xbf16>, vector<16x16xbf16> -> vector<16x144xbf16>
    %c0_9 = arith.constant 0 : index
    %c0_10 = arith.constant 0 : index
    %c0_11 = arith.constant 0 : index
    %15 = vector.load %arg5[%c0_9, %c0_10, %c0_11] : memref<5x144x128xbf16, #tpu.memory_space<vmem>>, vector<1x144x128xbf16>
    %16 = vector.shape_cast %15 : vector<1x144x128xbf16> to vector<144x128xbf16>
    %cst_12 = arith.constant dense<0.000000e+00> : vector<16x128xf32>
    %17 = tpu.matmul %14, %16, %cst_12 {dimension_numbers = #tpu.dot_dimension_numbers<[1], [0], [0], [1], [0, 0, 1, 1], [], []>} : vector<16x144xbf16>, vector<144x128xbf16>, vector<16x128xf32> -> vector<16x128xf32>
    %c0_13 = arith.constant 0 : index
    %c0_14 = arith.constant 0 : index
    %c0_15 = arith.constant 0 : index
    %18 = vector.load %arg6[%c0_13, %c0_14, %c0_15] : memref<5x1x128xf32, #tpu.memory_space<vmem>>, vector<1x1x128xf32>
    %19 = vector.shape_cast %18 : vector<1x1x128xf32> to vector<1x128xf32>
    %20 = vector.broadcast %19 : vector<1x128xf32> to vector<16x128xf32>
    %21 = arith.addf %17, %20 : vector<16x128xf32>
    %cst_16 = arith.constant 0.000000e+00 : f32
    %22 = vector.broadcast %cst_16 : f32 to vector<16x128xf32>
    %23 = arith.maximumf %21, %22 : vector<16x128xf32>
    %24 = arith.truncf %23 : vector<16x128xf32> to vector<16x128xbf16>
    %25 = tpu.concatenate %24, %5 in 1 : vector<16x128xbf16>, vector<16x16xbf16> -> vector<16x144xbf16>
    %c1 = arith.constant 1 : index
    %c0_17 = arith.constant 0 : index
    %c0_18 = arith.constant 0 : index
    %26 = vector.load %arg5[%c1, %c0_17, %c0_18] : memref<5x144x128xbf16, #tpu.memory_space<vmem>>, vector<1x144x128xbf16>
    %27 = vector.shape_cast %26 : vector<1x144x128xbf16> to vector<144x128xbf16>
    %cst_19 = arith.constant dense<0.000000e+00> : vector<16x128xf32>
    %28 = tpu.matmul %25, %27, %cst_19 {dimension_numbers = #tpu.dot_dimension_numbers<[1], [0], [0], [1], [0, 0, 1, 1], [], []>} : vector<16x144xbf16>, vector<144x128xbf16>, vector<16x128xf32> -> vector<16x128xf32>
    %c1_20 = arith.constant 1 : index
    %c0_21 = arith.constant 0 : index
    %c0_22 = arith.constant 0 : index
    %29 = vector.load %arg6[%c1_20, %c0_21, %c0_22] : memref<5x1x128xf32, #tpu.memory_space<vmem>>, vector<1x1x128xf32>
    %30 = vector.shape_cast %29 : vector<1x1x128xf32> to vector<1x128xf32>
    %31 = vector.broadcast %30 : vector<1x128xf32> to vector<16x128xf32>
    %32 = arith.addf %28, %31 : vector<16x128xf32>
    %cst_23 = arith.constant 0.000000e+00 : f32
    %33 = vector.broadcast %cst_23 : f32 to vector<16x128xf32>
    %34 = arith.maximumf %32, %33 : vector<16x128xf32>
    %35 = arith.truncf %34 : vector<16x128xf32> to vector<16x128xbf16>
    %36 = tpu.concatenate %35, %5 in 1 : vector<16x128xbf16>, vector<16x16xbf16> -> vector<16x144xbf16>
    %c2 = arith.constant 2 : index
    %c0_24 = arith.constant 0 : index
    %c0_25 = arith.constant 0 : index
    %37 = vector.load %arg5[%c2, %c0_24, %c0_25] : memref<5x144x128xbf16, #tpu.memory_space<vmem>>, vector<1x144x128xbf16>
    %38 = vector.shape_cast %37 : vector<1x144x128xbf16> to vector<144x128xbf16>
    %cst_26 = arith.constant dense<0.000000e+00> : vector<16x128xf32>
    %39 = tpu.matmul %36, %38, %cst_26 {dimension_numbers = #tpu.dot_dimension_numbers<[1], [0], [0], [1], [0, 0, 1, 1], [], []>} : vector<16x144xbf16>, vector<144x128xbf16>, vector<16x128xf32> -> vector<16x128xf32>
    %c2_27 = arith.constant 2 : index
    %c0_28 = arith.constant 0 : index
    %c0_29 = arith.constant 0 : index
    %40 = vector.load %arg6[%c2_27, %c0_28, %c0_29] : memref<5x1x128xf32, #tpu.memory_space<vmem>>, vector<1x1x128xf32>
    %41 = vector.shape_cast %40 : vector<1x1x128xf32> to vector<1x128xf32>
    %42 = vector.broadcast %41 : vector<1x128xf32> to vector<16x128xf32>
    %43 = arith.addf %39, %42 : vector<16x128xf32>
    %cst_30 = arith.constant 0.000000e+00 : f32
    %44 = vector.broadcast %cst_30 : f32 to vector<16x128xf32>
    %45 = arith.maximumf %43, %44 : vector<16x128xf32>
    %46 = arith.truncf %45 : vector<16x128xf32> to vector<16x128xbf16>
    %47 = tpu.concatenate %46, %5 in 1 : vector<16x128xbf16>, vector<16x16xbf16> -> vector<16x144xbf16>
    %c3 = arith.constant 3 : index
    %c0_31 = arith.constant 0 : index
    %c0_32 = arith.constant 0 : index
    %48 = vector.load %arg5[%c3, %c0_31, %c0_32] : memref<5x144x128xbf16, #tpu.memory_space<vmem>>, vector<1x144x128xbf16>
    %49 = vector.shape_cast %48 : vector<1x144x128xbf16> to vector<144x128xbf16>
    %cst_33 = arith.constant dense<0.000000e+00> : vector<16x128xf32>
    %50 = tpu.matmul %47, %49, %cst_33 {dimension_numbers = #tpu.dot_dimension_numbers<[1], [0], [0], [1], [0, 0, 1, 1], [], []>} : vector<16x144xbf16>, vector<144x128xbf16>, vector<16x128xf32> -> vector<16x128xf32>
    %c3_34 = arith.constant 3 : index
    %c0_35 = arith.constant 0 : index
    %c0_36 = arith.constant 0 : index
    %51 = vector.load %arg6[%c3_34, %c0_35, %c0_36] : memref<5x1x128xf32, #tpu.memory_space<vmem>>, vector<1x1x128xf32>
    %52 = vector.shape_cast %51 : vector<1x1x128xf32> to vector<1x128xf32>
    %53 = vector.broadcast %52 : vector<1x128xf32> to vector<16x128xf32>
    %54 = arith.addf %50, %53 : vector<16x128xf32>
    %cst_37 = arith.constant 0.000000e+00 : f32
    %55 = vector.broadcast %cst_37 : f32 to vector<16x128xf32>
    %56 = arith.maximumf %54, %55 : vector<16x128xf32>
    %57 = arith.truncf %56 : vector<16x128xf32> to vector<16x128xbf16>
    %58 = tpu.concatenate %57, %5 in 1 : vector<16x128xbf16>, vector<16x16xbf16> -> vector<16x144xbf16>
    %c4 = arith.constant 4 : index
    %c0_38 = arith.constant 0 : index
    %c0_39 = arith.constant 0 : index
    %59 = vector.load %arg5[%c4, %c0_38, %c0_39] : memref<5x144x128xbf16, #tpu.memory_space<vmem>>, vector<1x144x128xbf16>
    %60 = vector.shape_cast %59 : vector<1x144x128xbf16> to vector<144x128xbf16>
    %cst_40 = arith.constant dense<0.000000e+00> : vector<16x128xf32>
    %61 = tpu.matmul %58, %60, %cst_40 {dimension_numbers = #tpu.dot_dimension_numbers<[1], [0], [0], [1], [0, 0, 1, 1], [], []>} : vector<16x144xbf16>, vector<144x128xbf16>, vector<16x128xf32> -> vector<16x128xf32>
    %c4_41 = arith.constant 4 : index
    %c0_42 = arith.constant 0 : index
    %c0_43 = arith.constant 0 : index
    %62 = vector.load %arg6[%c4_41, %c0_42, %c0_43] : memref<5x1x128xf32, #tpu.memory_space<vmem>>, vector<1x1x128xf32>
    %63 = vector.shape_cast %62 : vector<1x1x128xf32> to vector<1x128xf32>
    %64 = vector.broadcast %63 : vector<1x128xf32> to vector<16x128xf32>
    %65 = arith.addf %61, %64 : vector<16x128xf32>
    %cst_44 = arith.constant 0.000000e+00 : f32
    %66 = vector.broadcast %cst_44 : f32 to vector<16x128xf32>
    %67 = arith.maximumf %65, %66 : vector<16x128xf32>
    %68 = arith.truncf %67 : vector<16x128xf32> to vector<16x128xbf16>
    %69 = tpu.concatenate %68, %5 in 1 : vector<16x128xbf16>, vector<16x16xbf16> -> vector<16x144xbf16>
    %c0_45 = arith.constant 0 : index
    %c0_46 = arith.constant 0 : index
    %70 = vector.load %arg7[%c0_45, %c0_46] : memref<144x16xbf16, #tpu.memory_space<vmem>>, vector<144x16xbf16>
    %cst_47 = arith.constant dense<0.000000e+00> : vector<16x16xf32>
    %71 = tpu.matmul %69, %70, %cst_47 {dimension_numbers = #tpu.dot_dimension_numbers<[1], [0], [0], [1], [0, 0, 1, 1], [], []>} : vector<16x144xbf16>, vector<144x16xbf16>, vector<16x16xf32> -> vector<16x16xf32>
    %c0_48 = arith.constant 0 : index
    %c0_49 = arith.constant 0 : index
    %72 = vector.load %arg8[%c0_48, %c0_49] : memref<1x16xf32, #tpu.memory_space<vmem>>, vector<1x16xf32>
    %73 = vector.broadcast %72 : vector<1x16xf32> to vector<16x16xf32>
    %74 = arith.addf %71, %73 : vector<16x16xf32>
    %c0_50 = arith.constant 0 : index
    %c0_51 = arith.constant 0 : index
    %75 = vector.load %arg9[%c0_50, %c0_51] : memref<16x16xf32, #tpu.memory_space<vmem>>, vector<16x16xf32>
    tpu.vector_store %arg9[%c0_50, %c0_51], %74 {strides = array<i32>} : memref<16x16xf32, #tpu.memory_space<vmem>>, vector<16x16xf32>,
    return
  }
  func.func @transform_0(%arg0: i32) -> (i32, i32) {
    %c0_i32 = arith.constant 0 : i32
    %c0_i32_0 = arith.constant 0 : i32
    return %arg0, %c0_i32 : i32, i32
  }
  func.func @transform_1(%arg0: i32) -> (i32, i32) {
    %c0_i32 = arith.constant 0 : i32
    %c0_i32_0 = arith.constant 0 : i32
    return %arg0, %c0_i32 : i32, i32
  }
  func.func @transform_2(%arg0: i32) -> (i32, i32) {
    %c0_i32 = arith.constant 0 : i32
    %c0_i32_0 = arith.constant 0 : i32
    %c0_i32_1 = arith.constant 0 : i32
    return %c0_i32, %c0_i32_0 : i32, i32
  }
  func.func @transform_3(%arg0: i32) -> (i32, i32) {
    %c0_i32 = arith.constant 0 : i32
    %c0_i32_0 = arith.constant 0 : i32
    %c0_i32_1 = arith.constant 0 : i32
    return %c0_i32, %c0_i32_0 : i32, i32
  }
  func.func @transform_4(%arg0: i32) -> (i32, i32, i32) {
    %c0_i32 = arith.constant 0 : i32
    %c0_i32_0 = arith.constant 0 : i32
    %c0_i32_1 = arith.constant 0 : i32
    %c0_i32_2 = arith.constant 0 : i32
    return %c0_i32, %c0_i32_0, %c0_i32_1 : i32, i32, i32
  }
  func.func @transform_5(%arg0: i32) -> (i32, i32, i32) {
    %c0_i32 = arith.constant 0 : i32
    %c0_i32_0 = arith.constant 0 : i32
    %c0_i32_1 = arith.constant 0 : i32
    %c0_i32_2 = arith.constant 0 : i32
    return %c0_i32, %c0_i32_0, %c0_i32_1 : i32, i32, i32
  }
  func.func @transform_6(%arg0: i32) -> (i32, i32) {
    %c0_i32 = arith.constant 0 : i32
    %c0_i32_0 = arith.constant 0 : i32
    %c0_i32_1 = arith.constant 0 : i32
    return %c0_i32, %c0_i32_0 : i32, i32
  }
  func.func @transform_7(%arg0: i32) -> (i32, i32) {
    %c0_i32 = arith.constant 0 : i32
    %c0_i32_0 = arith.constant 0 : i32
    %c0_i32_1 = arith.constant 0 : i32
    return %c0_i32, %c0_i32_0 : i32, i32
  }
  func.func @transform_8(%arg0: i32) -> (i32, i32) {
    %c0_i32 = arith.constant 0 : i32
    %c0_i32_0 = arith.constant 0 : i32
    return %arg0, %c0_i32 : i32, i32
  }
}

</mosaic_0001>

<llo_original>
// kernel: tpu_custom_call.1
$region0: #{tpu_custom_call.1}
  #allocation0 [shape = 'u32[]', space=smem, size = 0x4, offset = 0x4, fixed_abs, tag = 'smem constant byte address 0x4 - core index']
  #allocation1 [shape = 'u32[144,128]{1,0:T(1,128)}', space=vmem, size = 0x12000, scoped, tag = 'internal scratch']
  %s0 = inlined_call_operand.vmem [shape: f32[48,32], index: 0, kind: input, shape index: {}]
  %s1 = inlined_call_operand.vmem [shape: f32[48,8], index: 1, kind: input, shape index: {}]
  %s2 = inlined_call_operand.vmem [shape: bf16[32,128], index: 2, kind: input, shape index: {}]
  %s3 = inlined_call_operand.vmem [shape: f32[1,128], index: 3, kind: input, shape index: {}]
  %s4 = inlined_call_operand.hbm [shape: bf16[5,144,128], index: 4, kind: input, shape index: {}]
  %s5 = inlined_call_operand.vmem [shape: f32[5,1,128], index: 5, kind: input, shape index: {}]
  %s6 = inlined_call_operand.vmem [shape: bf16[144,16], index: 6, kind: input, shape index: {}]
  %s7 = inlined_call_operand.vmem [shape: f32[1,16], index: 7, kind: input, shape index: {}]
  %s8 = inlined_call_operand.vmem [shape: f32[48,16], index: 8, kind: output, shape index: {}]
  %s9 = sld [smem:[#allocation0]]
  $region69: #{tpu_custom_call.1} parent=0
    _
  %s11 = ssub.s32 1, %s9
  %s12 = scalar_select 0, %s11, %s9
  $region1: #{tpu_custom_call.1} parent=0
    #allocation2 [shape = 'u8[184320]{0}', space=vmem, size = 0x2d000, scoped, tag = 'input window, operand 4, single buffered']
    #allocation3 [shape = 's32[2]{0}', space=sflag, size = 0x8, scoped, tag = 'scoped memory for tpu_custom_call.1']
    %13 = vsyncpa [#allocation3], 0
    loop: start=0, step=1, limit=5
    $region2: #{tpu_custom_call.1} parent=1 // loop_pre_header
      _
    $region3: #{tpu_custom_call.1} parent=1 // loop_header
      %s15 = sphi 0, %s19
      %p16 = scmp.ge.s32.totalorder %s15, 5
      %s25 = sphi 0, %s27
      %s28 = sphi 0, %s25
      %s29 = sphi 0, %s28
      %s45 = sphi 0, %s29
      %s51 = sphi 0, %s53
      %s54 = sphi 0, %s51
      %s55 = sphi 0, %s54
      %s71 = sphi 0, %s55
      %s75 = sphi 0, %s75
      %s77 = sphi 0, %s75
      %s78 = sphi 0, %s77
      %s92 = sphi 0, %s78
      %s96 = sphi 0, %s96
      %s98 = sphi 0, %s96
      %s99 = sphi 0, %s98
      %s113 = sphi 0, %s99
      %s117 = sphi 0, %s117
      %s119 = sphi 0, %s117
      %s120 = sphi 0, %s119
      %s134 = sphi 0, %s120
      %s138 = sphi 0, %s138
      %s140 = sphi 0, %s138
      %s141 = sphi 0, %s140
      %s155 = sphi 0, %s141
      %s159 = sphi 0, %s159
      %s161 = sphi 0, %s159
      %s162 = sphi 0, %s161
      %s176 = sphi 0, %s162
      %s180 = sphi 0, %s180
      %s182 = sphi 0, %s180
      %s183 = sphi 0, %s182
      %s197 = sphi 0, %s183
      %s203 = sphi 0, %s205
      %s206 = sphi 0, %s203
      %s207 = sphi 0, %s206
      %s223 = sphi 0, %s207
    $region4: #{tpu_custom_call.1} parent=1 // loop_header_branch
      %18 = sbr.rel (%p16) target = $region8
    $region5: #{tpu_custom_call.1} parent=1 // loop_body
      %s20 = ssub.s32 %s15, 1
      %s21 = ssub.s32 %s15, 2
      %s22 = sadd.s32 %s15, 1
      %s23 = ssub.s32 %s15, %s22
      %p24 = scmp.eq.s32.totalorder %s23, 0
      %s26 = sadd.s32 %s25, 1
      %s27 = scalar_select %p24, %s25, %s26
      %p30 = pneg %p24
      %p31 = scmp.eq.s32.totalorder %s15, 2
      %p32 = por %p30, %p31
      %p33 = scmp.ne.s32.totalorder %s25, %s28
      %p34 = scmp.eq.s32.totalorder %s15, 0
      %p35 = por %p33, %p34
      %p36 = scmp.ne.s32.totalorder %s25, %s28
      %p37 = scmp.eq.s32.totalorder %s20, 2
      %p38 = por %p36, %p37
      %p39 = scmp.ne.s32.totalorder %s28, %s29
      %p40 = scmp.eq.s32.totalorder %s20, 0
      %p41 = por %p39, %p40
      %p42 = scmp.ne.s32.totalorder %s28, %s29
      %p43 = scmp.eq.s32.totalorder %s21, 2
      %p44 = por %p42, %p43
      %p46 = scmp.ne.s32.totalorder %s29, %s45
      %p47 = scmp.eq.s32.totalorder %s21, 0
      %p48 = por %p46, %p47
      %s49 = ssub.s32 %s15, %s22
      %p50 = scmp.eq.s32.totalorder %s49, 0
      %s52 = sadd.s32 %s51, 1
      %s53 = scalar_select %p50, %s51, %s52
      %p56 = pneg %p50
      %p57 = scmp.eq.s32.totalorder %s15, 2
      %p58 = por %p56, %p57
      %p59 = scmp.ne.s32.totalorder %s51, %s54
      %p60 = scmp.eq.s32.totalorder %s15, 0
      %p61 = por %p59, %p60
      %p62 = scmp.ne.s32.totalorder %s51, %s54
      %p63 = scmp.eq.s32.totalorder %s20, 2
      %p64 = por %p62, %p63
      %p65 = scmp.ne.s32.totalorder %s54, %s55
      %p66 = scmp.eq.s32.totalorder %s20, 0
      %p67 = por %p65, %p66
      %p68 = scmp.ne.s32.totalorder %s54, %s55
      %p69 = scmp.eq.s32.totalorder %s21, 2
      %p70 = por %p68, %p69
      %p72 = scmp.ne.s32.totalorder %s55, %s71
      %p73 = scmp.eq.s32.totalorder %s21, 0
      %p74 = por %p72, %p73
      %s76 = sadd.s32 %s75, 1
      %p79 = scmp.eq.s32.totalorder %s15, 2
      %p80 = scmp.ne.s32.totalorder %s75, %s77
      %p81 = scmp.eq.s32.totalorder %s15, 0
      %p82 = por %p80, %p81
      %p83 = scmp.ne.s32.totalorder %s75, %s77
      %p84 = scmp.eq.s32.totalorder %s20, 2
      %p85 = por %p83, %p84
      %p86 = scmp.ne.s32.totalorder %s77, %s78
      %p87 = scmp.eq.s32.totalorder %s20, 0
      %p88 = por %p86, %p87
      %p89 = scmp.ne.s32.totalorder %s77, %s78
      %p90 = scmp.eq.s32.totalorder %s21, 2
      %p91 = por %p89, %p90
      %p93 = scmp.ne.s32.totalorder %s78, %s92
      %p94 = scmp.eq.s32.totalorder %s21, 0
      %p95 = por %p93, %p94
      %s97 = sadd.s32 %s96, 1
      %p100 = scmp.eq.s32.totalorder %s15, 2
      %p101 = scmp.ne.s32.totalorder %s96, %s98
      %p102 = scmp.eq.s32.totalorder %s15, 0
      %p103 = por %p101, %p102
      %p104 = scmp.ne.s32.totalorder %s96, %s98
      %p105 = scmp.eq.s32.totalorder %s20, 2
      %p106 = por %p104, %p105
      %p107 = scmp.ne.s32.totalorder %s98, %s99
      %p108 = scmp.eq.s32.totalorder %s20, 0
      %p109 = por %p107, %p108
      %p110 = scmp.ne.s32.totalorder %s98, %s99
      %p111 = scmp.eq.s32.totalorder %s21, 2
      %p112 = por %p110, %p111
      %p114 = scmp.ne.s32.totalorder %s99, %s113
      %p115 = scmp.eq.s32.totalorder %s21, 0
      %p116 = por %p114, %p115
      %s118 = sadd.s32 %s117, 1
      %p121 = scmp.eq.s32.totalorder %s15, 2
      %p122 = scmp.ne.s32.totalorder %s117, %s119
      %p123 = scmp.eq.s32.totalorder %s15, 0
      %p124 = por %p122, %p123
      %p125 = scmp.ne.s32.totalorder %s117, %s119
      %p126 = scmp.eq.s32.totalorder %s20, 2
      %p127 = por %p125, %p126
      %p128 = scmp.ne.s32.totalorder %s119, %s120
      %p129 = scmp.eq.s32.totalorder %s20, 0
      %p130 = por %p128, %p129
      %p131 = scmp.ne.s32.totalorder %s119, %s120
      %p132 = scmp.eq.s32.totalorder %s21, 2
      %p133 = por %p131, %p132
      %p135 = scmp.ne.s32.totalorder %s120, %s134
      %p136 = scmp.eq.s32.totalorder %s21, 0
      %p137 = por %p135, %p136
      %s139 = sadd.s32 %s138, 1
      %p142 = scmp.eq.s32.totalorder %s15, 2
      %p143 = scmp.ne.s32.totalorder %s138, %s140
      %p144 = scmp.eq.s32.totalorder %s15, 0
      %p145 = por %p143, %p144
      %p146 = scmp.ne.s32.totalorder %s138, %s140
      %p147 = scmp.eq.s32.totalorder %s20, 2
      %p148 = por %p146, %p147
      %p149 = scmp.ne.s32.totalorder %s140, %s141
      %p150 = scmp.eq.s32.totalorder %s20, 0
      %p151 = por %p149, %p150
      %p152 = scmp.ne.s32.totalorder %s140, %s141
      %p153 = scmp.eq.s32.totalorder %s21, 2
      %p154 = por %p152, %p153
      %p156 = scmp.ne.s32.totalorder %s141, %s155
      %p157 = scmp.eq.s32.totalorder %s21, 0
      %p158 = por %p156, %p157
      %s160 = sadd.s32 %s159, 1
      %p163 = scmp.eq.s32.totalorder %s15, 2
      %p164 = scmp.ne.s32.totalorder %s159, %s161
      %p165 = scmp.eq.s32.totalorder %s15, 0
      %p166 = por %p164, %p165
      %p167 = scmp.ne.s32.totalorder %s159, %s161
      %p168 = scmp.eq.s32.totalorder %s20, 2
      %p169 = por %p167, %p168
      %p170 = scmp.ne.s32.totalorder %s161, %s162
      %p171 = scmp.eq.s32.totalorder %s20, 0
      %p172 = por %p170, %p171
      %p173 = scmp.ne.s32.totalorder %s161, %s162
      %p174 = scmp.eq.s32.totalorder %s21, 2
      %p175 = por %p173, %p174
      %p177 = scmp.ne.s32.totalorder %s162, %s176
      %p178 = scmp.eq.s32.totalorder %s21, 0
      %p179 = por %p177, %p178
      %s181 = sadd.s32 %s180, 1
      %p184 = scmp.eq.s32.totalorder %s15, 2
      %p185 = scmp.ne.s32.totalorder %s180, %s182
      %p186 = scmp.eq.s32.totalorder %s15, 0
      %p187 = por %p185, %p186
      %p188 = scmp.ne.s32.totalorder %s180, %s182
      %p189 = scmp.eq.s32.totalorder %s20, 2
      %p190 = por %p188, %p189
      %p191 = scmp.ne.s32.totalorder %s182, %s183
      %p192 = scmp.eq.s32.totalorder %s20, 0
      %p193 = por %p191, %p192
      %p194 = scmp.ne.s32.totalorder %s182, %s183
      %p195 = scmp.eq.s32.totalorder %s21, 2
      %p196 = por %p194, %p195
      %p198 = scmp.ne.s32.totalorder %s183, %s197
      %p199 = scmp.eq.s32.totalorder %s21, 0
      %p200 = por %p198, %p199
      %s201 = ssub.s32 %s15, %s22
      %p202 = scmp.eq.s32.totalorder %s201, 0
      %s204 = sadd.s32 %s203, 1
      %s205 = scalar_select %p202, %s203, %s204
      %p208 = pneg %p202
      %p209 = scmp.eq.s32.totalorder %s15, 2
      %p210 = por %p208, %p209
      %p211 = scmp.ne.s32.totalorder %s203, %s206
      %p212 = scmp.eq.s32.totalorder %s15, 0
      %p213 = por %p211, %p212
      %p214 = scmp.ne.s32.totalorder %s203, %s206
      %p215 = scmp.eq.s32.totalorder %s20, 2
      %p216 = por %p214, %p215
      %p217 = scmp.ne.s32.totalorder %s206, %s207
      %p218 = scmp.eq.s32.totalorder %s20, 0
      %p219 = por %p217, %p218
      %p220 = scmp.ne.s32.totalorder %s206, %s207
      %p221 = scmp.eq.s32.totalorder %s21, 2
      %p222 = por %p220, %p221
      %p224 = scmp.ne.s32.totalorder %s207, %s223
      %p225 = scmp.eq.s32.totalorder %s21, 0
      %p226 = por %p224, %p225
      %p227 = scmp.le.s32.totalorder 1, %s15
      %p228 = scmp.lt.s32.totalorder %s15, 4
      %p229 = pnand %p227, %p228
      %p230 = pneg %p229
      // Predicated region
      $region9: #{tpu_custom_call.1} parent=5 // pred_check
        _
      $region10: #{tpu_custom_call.1} parent=5 // pred_check_branch
        %232 = sbr.rel (%p229) target = $region12
      $region11: #{tpu_custom_call.1} parent=5 // pred_region
        %s233 = ssub.s32 %s15, 1
        // Predicated region
        $region13: #{tpu_custom_call.1} parent=11 // pred_check
          %p234 = pneg %p88
        $region14: #{tpu_custom_call.1} parent=11 // pred_check_branch
          %236 = sbr.rel (%p234) target = $region16
        $region15: #{tpu_custom_call.1} parent=11 // pred_region
          _
        $region16: #{tpu_custom_call.1} parent=11 // pred_fallthru
          _
        // Predicated region
        $region17: #{tpu_custom_call.1} parent=11 // pred_check
          %p237 = pneg %p109
        $region18: #{tpu_custom_call.1} parent=11 // pred_check_branch
          %239 = sbr.rel (%p237) target = $region20
        $region19: #{tpu_custom_call.1} parent=11 // pred_region
          _
        $region20: #{tpu_custom_call.1} parent=11 // pred_fallthru
          _
        // Predicated region
        $region21: #{tpu_custom_call.1} parent=11 // pred_check
          %p240 = pneg %p130
        $region22: #{tpu_custom_call.1} parent=11 // pred_check_branch
          %242 = sbr.rel (%p240) target = $region24
        $region23: #{tpu_custom_call.1} parent=11 // pred_region
          %s244 = ssub.s32 5760, 5760
          %245 = vsyncadd [#allocation3], %s244
          %s246 = sshll.u32 [#allocation2], 4
          %s247 = int_to_ptr.vmem [resolvable:$true] %s246
          %252 = dma.hbm_to_vmem [thread:$0]  %s4, 5760, %s247, [#allocation3], 64, 64, 4
        $region24: #{tpu_custom_call.1} parent=11 // pred_fallthru
          _
        // Predicated region
        $region25: #{tpu_custom_call.1} parent=11 // pred_check
          %p253 = pneg %p151
        $region26: #{tpu_custom_call.1} parent=11 // pred_check_branch
          %255 = sbr.rel (%p253) target = $region28
        $region27: #{tpu_custom_call.1} parent=11 // pred_region
          _
        $region28: #{tpu_custom_call.1} parent=11 // pred_fallthru
          _
        // Predicated region
        $region29: #{tpu_custom_call.1} parent=11 // pred_check
          %p256 = pneg %p172
        $region30: #{tpu_custom_call.1} parent=11 // pred_check_branch
          %258 = sbr.rel (%p256) target = $region32
        $region31: #{tpu_custom_call.1} parent=11 // pred_region
          _
        $region32: #{tpu_custom_call.1} parent=11 // pred_fallthru
          _
        // Predicated region
        $region33: #{tpu_custom_call.1} parent=11 // pred_check
          %p259 = pneg %p193
        $region34: #{tpu_custom_call.1} parent=11 // pred_check_branch
          %261 = sbr.rel (%p259) target = $region36
        $region35: #{tpu_custom_call.1} parent=11 // pred_region
          _
        $region36: #{tpu_custom_call.1} parent=11 // pred_fallthru
          _
      $region12: #{tpu_custom_call.1} parent=5 // pred_fallthru
        _
      %p262 = scmp.lt.s32.totalorder %s15, 3
      // Predicated region
      $region37: #{tpu_custom_call.1} parent=5 // pred_check
        %p263 = pneg %p262
      $region38: #{tpu_custom_call.1} parent=5 // pred_check_branch
        %265 = sbr.rel (%p263) target = $region40
      $region39: #{tpu_custom_call.1} parent=5 // pred_region
        // Predicated region
        $region41: #{tpu_custom_call.1} parent=39 // pred_check
          %p266 = pneg %p35
        $region42: #{tpu_custom_call.1} parent=39 // pred_check_branch
          %268 = sbr.rel (%p266) target = $region44
        $region43: #{tpu_custom_call.1} parent=39 // pred_region
          %s269 = smul.u32 2, %s15
          %p270 = scmp.lt.s32.totalorder %s269, 5
          %s271 = scalar_select %p270, %s269, 5
          %s272 = smul.addr %s271, 8
          %s273 = scalar_lea.vmem %s0, %s272
          %s274 = smul.u32 2, %s15
        $region44: #{tpu_custom_call.1} parent=39 // pred_fallthru
          _
        // Predicated region
        $region45: #{tpu_custom_call.1} parent=39 // pred_check
          %p275 = pneg %p61
        $region46: #{tpu_custom_call.1} parent=39 // pred_check_branch
          %277 = sbr.rel (%p275) target = $region48
        $region47: #{tpu_custom_call.1} parent=39 // pred_region
          %s278 = smul.u32 2, %s15
          %p279 = scmp.lt.s32.totalorder %s278, 5
          %s280 = scalar_select %p279, %s278, 5
          %s281 = smul.addr %s280, 8
          %s282 = scalar_lea.vmem %s1, %s281
          %s283 = smul.u32 2, %s15
        $region48: #{tpu_custom_call.1} parent=39 // pred_fallthru
          _
      $region40: #{tpu_custom_call.1} parent=5 // pred_fallthru
        _
      %p284 = scmp.le.s32.totalorder 1, %s15
      %p285 = scmp.lt.s32.totalorder %s15, 4
      %p286 = pnand %p284, %p285
      %p287 = pneg %p286
      // Predicated region
      $region49: #{tpu_custom_call.1} parent=5 // pred_check
        _
      $region50: #{tpu_custom_call.1} parent=5 // pred_check_branch
        %289 = sbr.rel (%p286) target = $region52
      $region51: #{tpu_custom_call.1} parent=5 // pred_region
        %s290 = ssub.s32 %s15, 1
        // Predicated region
        $region53: #{tpu_custom_call.1} parent=51 // pred_check
          %p291 = pneg %p130
        $region54: #{tpu_custom_call.1} parent=51 // pred_check_branch
          %293 = sbr.rel (%p291) target = $region56
        $region55: #{tpu_custom_call.1} parent=51 // pred_region
          %294 = dma.done [#allocation3], 5760
        $region56: #{tpu_custom_call.1} parent=51 // pred_fallthru
          _
        %s295 = smul.u32 2, %s20
        %p296 = scmp.lt.s32.totalorder %s295, 5
        %s297 = scalar_select %p296, %s295, 5
        %s298 = smul.addr %s297, 8
        %s299 = scalar_lea.vmem %s0, %s298
        %p300 = pneg %p41
        %p301 = pneg %p38
        %s302 = smul.u32 2, %s20
        %p303 = scmp.lt.s32.totalorder %s302, 5
        %s304 = scalar_select %p303, %s302, 5
        %s305 = smul.addr %s304, 8
        %s306 = scalar_lea.vmem %s1, %s305
        %p307 = pneg %p67
        %p308 = pneg %p64
        %p309 = pneg %p88
        %p310 = pneg %p85
        %p311 = pneg %p109
        %p312 = pneg %p106
        %p313 = pneg %p130
        %p314 = pneg %p127
        %p315 = pneg %p151
        %p316 = pneg %p148
        %p317 = pneg %p172
        %p318 = pneg %p169
        %p319 = pneg %p193
        %p320 = pneg %p190
        %p321 = pneg %p219
        %p322 = pneg %p216
        %s323 = smul.u32 2, %s20
        %p324 = scmp.lt.s32.totalorder %s323, 5
        %s325 = scalar_select %p324, %s323, 5
        %s326 = smul.addr %s325, 8
        %s327 = scalar_lea.vmem %s8, %s326
        %s328 = smul.u32 2, %s20
        %p329 = scmp.lt.s32.totalorder %s328, 5
        %s330 = scalar_select %p329, %s328, 5
        %s331 = smul.addr %s330, 8
        %s332 = scalar_lea.vmem %s0, %s331
        %s333 = smul.u32 2, %s20
        %s334 = smul.u32 2, %s20
        %p335 = scmp.lt.s32.totalorder %s334, 5
        %s336 = scalar_select %p335, %s334, 5
        %s337 = smul.addr %s336, 8
        %s338 = scalar_lea.vmem %s1, %s337
        %s339 = smul.u32 2, %s20
        %s340 = smul.u32 2, %s20
        %p341 = scmp.lt.s32.totalorder %s340, 5
        %s342 = scalar_select %p341, %s340, 5
        %s343 = smul.addr %s342, 8
        %s344 = scalar_lea.vmem %s8, %s343
        %s345 = smul.u32 2, %s20
        %v347 = vld [vmem:[%s332] sm:$0xff]
        %v348 = vld [vmem:[%s332 + $0x8] sm:$0xff]
        %v349 = vpack.c.bf16 %v348, %v347
        %v350 = vld [vmem:[%s338] sm:$0xff]
        %v351 = vld [vmem:[%s338 + $0x8] sm:$0xff]
        %v352 = vpack.c.bf16 %v351, %v350
        %vm353 = vcmask 64512
        %v356 = vsel %vm353, %v352, 0
        %v357 = vld [vmem:[%s2] sm:$0xf]
        %v358 = vld [vmem:[%s2 + $0x4] sm:$0xf]
        %v359 = vld [vmem:[%s2 + $0x8] sm:$0xf]
        %v360 = vld [vmem:[%s2 + $0xc] sm:$0xf]
        %v361 = vld [vmem:[%s3] sm:$0x1]
        %v363 = vlaneseq
        %v364 = vshrl.u32 %v363, 7
        %v365 = vsub.s32 0, %v364
        %v366 = vrot.slane %v361, %v365
        %v372 = vunpack.c.l.b16 %v357
        %v373 = vunpack.c.l.b16 %v358
        %v374 = vunpack.c.l.b16 %v359
        %v375 = vunpack.c.l.b16 %v360
        %v376 = vpack.c.b16 %v373, %v372
        %v377 = vpack.c.b16 %v375, %v374
        %vm380 = vcmask 261120
        %v382 = vsel %vm380, %v349, 0
        %384 = vmatprep.subr.bf16.mxu0 0
        %385 = vmatpush1.bf16.msra.mxu0 %v376
        %386 = vmatprep.subr.bf16.mxu0 0
        %387 = vmatpush1.bf16.msra.mxu0 %v377
        %388 = vmatprep.subr.bf16.mxu0 0
        %389 = vmatpush1.bf16.msra.mxu0 0
        %390 = vmatprep.subr.bf16.mxu0 0
        %391 = vmatpush1.bf16.msra.mxu0 0
        %392 = vmatprep.subr.bf16.mxu0 0
        %393 = vmatpush1.bf16.msra.mxu0 0
        %394 = vmatprep.subr.bf16.mxu0 0
        %395 = vmatpush1.bf16.msra.mxu0 0
        %396 = vmatprep.subr.bf16.mxu0 0
        %397 = vmatpush1.bf16.msra.mxu0 0
        %398 = vmatprep.subr.bf16.mxu0 0
        %399 = vmatpush1.bf16.msra.mxu0 0
        %400 = vmatprep.subr.bf16.mxu0 0
        %401 = vmatpush1.bf16.msra.mxu0 0
        %402 = vmatprep.subr.bf16.mxu0 0
        %403 = vmatpush1.bf16.msra.mxu0 0
        %404 = vmatprep.subr.bf16.mxu0 0
        %405 = vmatpush1.bf16.msra.mxu0 0
        %406 = vmatprep.subr.bf16.mxu0 0
        %407 = vmatpush1.bf16.msra.mxu0 0
        %408 = vmatprep.subr.bf16.mxu0 0
        %409 = vmatpush1.bf16.msra.mxu0 0
        %410 = vmatprep.subr.bf16.mxu0 0
        %411 = vmatpush1.bf16.msra.mxu0 0
        %412 = vmatprep.subr.bf16.mxu0 0
        %413 = vmatpush1.bf16.msra.mxu0 0
        %414 = vmatprep.subr.bf16.mxu0 0
        %415 = vmatpush1.bf16.msra.mxu0 0
        %416 = vmatprep.mubr.bf16.mxu0 0
        %417 = vmatmul.mubr.bf16.gmra.mrb[0].mxu0 %v382
        %v418 = vpop.f32.mrb[0].mxu0
        %v419 = vadd.f32 %v366, %v418
        %v420 = vpop.f32.mrb[0].mxu0
        %v421 = vpop.f32.mrb[0].mxu0
        %v422 = vadd.f32 %v366, %v421
        %v423 = vpop.f32.mrb[0].mxu0
        %424 = vdwg.mxu0
        %v425 = vmax.f32 %v419, 0.0
        %v426 = vmax.f32 %v422, 0.0
        %v427 = vpack.c.bf16 %v426, %v425
        %v428 = vld [vmem:[#allocation2] sm:$0xf]
        %v429 = vld [vmem:[#allocation2 + $0x4] sm:$0xf]
        %v430 = vld [vmem:[#allocation2 + $0x8] sm:$0xf]
        %v431 = vld [vmem:[#allocation2 + $0xc] sm:$0xf]
        %v432 = vld [vmem:[#allocation2 + $0x10] sm:$0xf]
        %v433 = vld [vmem:[#allocation2 + $0x14] sm:$0xf]
        %v434 = vld [vmem:[#allocation2 + $0x18] sm:$0xf]
        %v435 = vld [vmem:[#allocation2 + $0x1c] sm:$0xf]
        %v436 = vld [vmem:[#allocation2 + $0x20] sm:$0xf]
        %v437 = vld [vmem:[#allocation2 + $0x24] sm:$0xf]
        %v438 = vld [vmem:[#allocation2 + $0x28] sm:$0xf]
        %v439 = vld [vmem:[#allocation2 + $0x2c] sm:$0xf]
        %v440 = vld [vmem:[#allocation2 + $0x30] sm:$0xf]
        %v441 = vld [vmem:[#allocation2 + $0x34] sm:$0xf]
        %v442 = vld [vmem:[#allocation2 + $0x38] sm:$0xf]
        %v443 = vld [vmem:[#allocation2 + $0x3c] sm:$0xf]
        %v444 = vld [vmem:[#allocation2 + $0x40] sm:$0xf]
        %v445 = vld [vmem:[#allocation2 + $0x44] sm:$0xf]
        %v446 = vld [vmem:[%s5] sm:$0x1]
        %v448 = vlaneseq
        %v449 = vshrl.u32 %v448, 7
        %v450 = vsub.s32 0, %v449
        %v451 = vrot.slane %v446, %v450
        %v471 = vunpack.c.l.b16 %v428
        %v472 = vunpack.c.l.b16 %v429
        %v473 = vunpack.c.l.b16 %v430
        %v474 = vunpack.c.l.b16 %v431
        %v475 = vunpack.c.l.b16 %v432
        %v476 = vunpack.c.l.b16 %v433
        %v477 = vunpack.c.l.b16 %v434
        %v478 = vunpack.c.l.b16 %v435
        %v479 = vunpack.c.l.b16 %v436
        %v480 = vunpack.c.l.b16 %v437
        %v481 = vunpack.c.l.b16 %v438
        %v482 = vunpack.c.l.b16 %v439
        %v483 = vunpack.c.l.b16 %v440
        %v484 = vunpack.c.l.b16 %v441
        %v485 = vunpack.c.l.b16 %v442
        %v486 = vunpack.c.l.b16 %v443
        %v487 = vunpack.c.l.b16 %v444
        %v488 = vunpack.c.l.b16 %v445
        %v489 = vpack.c.b16 %v472, %v471
        %v490 = vpack.c.b16 %v474, %v473
        %v491 = vpack.c.b16 %v476, %v475
        %v492 = vpack.c.b16 %v478, %v477
        %v493 = vpack.c.b16 %v480, %v479
        %v494 = vpack.c.b16 %v482, %v481
        %v495 = vpack.c.b16 %v484, %v483
        %v496 = vpack.c.b16 %v486, %v485
        %v497 = vpack.c.b16 %v488, %v487
        %vm507 = vcmask 130048
        %v508 = vsel %vm507, %v356, 0
        %510 = vmatprep.subr.bf16.mxu0 0
        %511 = vmatpush1.bf16.msra.mxu0 %v489
        %512 = vmatprep.subr.bf16.mxu0 0
        %513 = vmatpush1.bf16.msra.mxu0 %v490
        %514 = vmatprep.subr.bf16.mxu0 0
        %515 = vmatpush1.bf16.msra.mxu0 %v491
        %516 = vmatprep.subr.bf16.mxu0 0
        %517 = vmatpush1.bf16.msra.mxu0 %v492
        %518 = vmatprep.subr.bf16.mxu0 0
        %519 = vmatpush1.bf16.msra.mxu0 %v493
        %520 = vmatprep.subr.bf16.mxu0 0
        %521 = vmatpush1.bf16.msra.mxu0 %v494
        %522 = vmatprep.subr.bf16.mxu0 0
        %523 = vmatpush1.bf16.msra.mxu0 %v495
        %524 = vmatprep.subr.bf16.mxu0 0
        %525 = vmatpush1.bf16.msra.mxu0 %v496
        %526 = vmatprep.subr.bf16.mxu0 0
        %527 = vmatpush1.bf16.msra.mxu0 %v497
        %528 = vmatprep.subr.bf16.mxu0 0
        %529 = vmatpush1.bf16.msra.mxu0 0
        %530 = vmatprep.subr.bf16.mxu0 0
        %531 = vmatpush1.bf16.msra.mxu0 0
        %532 = vmatprep.subr.bf16.mxu0 0
        %533 = vmatpush1.bf16.msra.mxu0 0
        %534 = vmatprep.subr.bf16.mxu0 0
        %535 = vmatpush1.bf16.msra.mxu0 0
        %536 = vmatprep.subr.bf16.mxu0 0
        %537 = vmatpush1.bf16.msra.mxu0 0
        %538 = vmatprep.subr.bf16.mxu0 0
        %539 = vmatpush1.bf16.msra.mxu0 0
        %540 = vmatprep.subr.bf16.mxu0 0
        %541 = vmatpush1.bf16.msra.mxu0 0
        %542 = vmatprep.mubr.bf16.mxu0 %v508
        %543 = vmatmul.mubr.bf16.gmra.mrb[0].mxu0 %v427
        %v544 = vpop.f32.mrb[0].mxu0
        %v545 = vadd.f32 %v451, %v544
        %v546 = vpop.f32.mrb[0].mxu0
        %v547 = vpop.f32.mrb[0].mxu0
        %v548 = vadd.f32 %v451, %v547
        %v549 = vpop.f32.mrb[0].mxu0
        %550 = vdwg.mxu0
        %v551 = vmax.f32 %v545, 0.0
        %v552 = vmax.f32 %v548, 0.0
        %v553 = vpack.c.bf16 %v552, %v551
        %s554 = scalar_lea.vmem [#allocation2], 72
        %v555 = vld [vmem:[%s554] sm:$0xf]
        %v556 = vld [vmem:[%s554 + $0x4] sm:$0xf]
        %v557 = vld [vmem:[%s554 + $0x8] sm:$0xf]
        %v558 = vld [vmem:[%s554 + $0xc] sm:$0xf]
        %v559 = vld [vmem:[%s554 + $0x10] sm:$0xf]
        %v560 = vld [vmem:[%s554 + $0x14] sm:$0xf]
        %v561 = vld [vmem:[%s554 + $0x18] sm:$0xf]
        %v562 = vld [vmem:[%s554 + $0x1c] sm:$0xf]
        %v563 = vld [vmem:[%s554 + $0x20] sm:$0xf]
        %v564 = vld [vmem:[%s554 + $0x24] sm:$0xf]
        %v565 = vld [vmem:[%s554 + $0x28] sm:$0xf]
        %v566 = vld [vmem:[%s554 + $0x2c] sm:$0xf]
        %v567 = vld [vmem:[%s554 + $0x30] sm:$0xf]
        %v568 = vld [vmem:[%s554 + $0x34] sm:$0xf]
        %v569 = vld [vmem:[%s554 + $0x38] sm:$0xf]
        %v570 = vld [vmem:[%s554 + $0x3c] sm:$0xf]
        %v571 = vld [vmem:[%s554 + $0x40] sm:$0xf]
        %v572 = vld [vmem:[%s554 + $0x44] sm:$0xf]
        %s573 = scalar_lea.vmem %s5, 1
        %v574 = vld [vmem:[%s573] sm:$0x1]
        %v576 = vlaneseq
        %v577 = vshrl.u32 %v576, 7
        %v578 = vsub.s32 0, %v577
        %v579 = vrot.slane %v574, %v578
        %v599 = vunpack.c.l.b16 %v555
        %v600 = vunpack.c.l.b16 %v556
        %v601 = vunpack.c.l.b16 %v557
        %v602 = vunpack.c.l.b16 %v558
        %v603 = vunpack.c.l.b16 %v559
        %v604 = vunpack.c.l.b16 %v560
        %v605 = vunpack.c.l.b16 %v561
        %v606 = vunpack.c.l.b16 %v562
        %v607 = vunpack.c.l.b16 %v563
        %v608 = vunpack.c.l.b16 %v564
        %v609 = vunpack.c.l.b16 %v565
        %v610 = vunpack.c.l.b16 %v566
        %v611 = vunpack.c.l.b16 %v567
        %v612 = vunpack.c.l.b16 %v568
        %v613 = vunpack.c.l.b16 %v569
        %v614 = vunpack.c.l.b16 %v570
        %v615 = vunpack.c.l.b16 %v571
        %v616 = vunpack.c.l.b16 %v572
        %v617 = vpack.c.b16 %v600, %v599
        %v618 = vpack.c.b16 %v602, %v601
        %v619 = vpack.c.b16 %v604, %v603
        %v620 = vpack.c.b16 %v606, %v605
        %v621 = vpack.c.b16 %v608, %v607
        %v622 = vpack.c.b16 %v610, %v609
        %v623 = vpack.c.b16 %v612, %v611
        %v624 = vpack.c.b16 %v614, %v613
        %v625 = vpack.c.b16 %v616, %v615
        %635 = vmatprep.subr.bf16.mxu0 0
        %636 = vmatpush1.bf16.msra.mxu0 %v617
        %637 = vmatprep.subr.bf16.mxu0 0
        %638 = vmatpush1.bf16.msra.mxu0 %v618
        %639 = vmatprep.subr.bf16.mxu0 0
        %640 = vmatpush1.bf16.msra.mxu0 %v619
        %641 = vmatprep.subr.bf16.mxu0 0
        %642 = vmatpush1.bf16.msra.mxu0 %v620
        %643 = vmatprep.subr.bf16.mxu0 0
        %644 = vmatpush1.bf16.msra.mxu0 %v621
        %645 = vmatprep.subr.bf16.mxu0 0
        %646 = vmatpush1.bf16.msra.mxu0 %v622
        %647 = vmatprep.subr.bf16.mxu0 0
        %648 = vmatpush1.bf16.msra.mxu0 %v623
        %649 = vmatprep.subr.bf16.mxu0 0
        %650 = vmatpush1.bf16.msra.mxu0 %v624
        %651 = vmatprep.subr.bf16.mxu0 0
        %652 = vmatpush1.bf16.msra.mxu0 %v625
        %653 = vmatprep.subr.bf16.mxu0 0
        %654 = vmatpush1.bf16.msra.mxu0 0
        %655 = vmatprep.subr.bf16.mxu0 0
        %656 = vmatpush1.bf16.msra.mxu0 0
        %657 = vmatprep.subr.bf16.mxu0 0
        %658 = vmatpush1.bf16.msra.mxu0 0
        %659 = vmatprep.subr.bf16.mxu0 0
        %660 = vmatpush1.bf16.msra.mxu0 0
        %661 = vmatprep.subr.bf16.mxu0 0
        %662 = vmatpush1.bf16.msra.mxu0 0
        %663 = vmatprep.subr.bf16.mxu0 0
        %664 = vmatpush1.bf16.msra.mxu0 0
        %665 = vmatprep.subr.bf16.mxu0 0
        %666 = vmatpush1.bf16.msra.mxu0 0
        %667 = vmatprep.mubr.bf16.mxu0 %v508
        %668 = vmatmul.mubr.bf16.gmra.mrb[0].mxu0 %v553
        %v669 = vpop.f32.mrb[0].mxu0
        %v670 = vadd.f32 %v579, %v669
        %v671 = vpop.f32.mrb[0].mxu0
        %v672 = vpop.f32.mrb[0].mxu0
        %v673 = vadd.f32 %v579, %v672
        %v674 = vpop.f32.mrb[0].mxu0
        %675 = vdwg.mxu0
        %v676 = vmax.f32 %v670, 0.0
        %v677 = vmax.f32 %v673, 0.0
        %v678 = vpack.c.bf16 %v677, %v676
        %s679 = scalar_lea.vmem [#allocation2], 144
        %v680 = vld [vmem:[%s679] sm:$0xf]
        %v681 = vld [vmem:[%s679 + $0x4] sm:$0xf]
        %v682 = vld [vmem:[%s679 + $0x8] sm:$0xf]
        %v683 = vld [vmem:[%s679 + $0xc] sm:$0xf]
        %v684 = vld [vmem:[%s679 + $0x10] sm:$0xf]
        %v685 = vld [vmem:[%s679 + $0x14] sm:$0xf]
        %v686 = vld [vmem:[%s679 + $0x18] sm:$0xf]
        %v687 = vld [vmem:[%s679 + $0x1c] sm:$0xf]
        %v688 = vld [vmem:[%s679 + $0x20] sm:$0xf]
        %v689 = vld [vmem:[%s679 + $0x24] sm:$0xf]
        %v690 = vld [vmem:[%s679 + $0x28] sm:$0xf]
        %v691 = vld [vmem:[%s679 + $0x2c] sm:$0xf]
        %v692 = vld [vmem:[%s679 + $0x30] sm:$0xf]
        %v693 = vld [vmem:[%s679 + $0x34] sm:$0xf]
        %v694 = vld [vmem:[%s679 + $0x38] sm:$0xf]
        %v695 = vld [vmem:[%s679 + $0x3c] sm:$0xf]
        %v696 = vld [vmem:[%s679 + $0x40] sm:$0xf]
        %v697 = vld [vmem:[%s679 + $0x44] sm:$0xf]
        %s698 = scalar_lea.vmem %s5, 2
        %v699 = vld [vmem:[%s698] sm:$0x1]
        %v701 = vlaneseq
        %v702 = vshrl.u32 %v701, 7
        %v703 = vsub.s32 0, %v702
        %v704 = vrot.slane %v699, %v703
        %v724 = vunpack.c.l.b16 %v680
        %v725 = vunpack.c.l.b16 %v681
        %v726 = vunpack.c.l.b16 %v682
        %v727 = vunpack.c.l.b16 %v683
        %v728 = vunpack.c.l.b16 %v684
        %v729 = vunpack.c.l.b16 %v685
        %v730 = vunpack.c.l.b16 %v686
        %v731 = vunpack.c.l.b16 %v687
        %v732 = vunpack.c.l.b16 %v688
        %v733 = vunpack.c.l.b16 %v689
        %v734 = vunpack.c.l.b16 %v690
        %v735 = vunpack.c.l.b16 %v691
        %v736 = vunpack.c.l.b16 %v692
        %v737 = vunpack.c.l.b16 %v693
        %v738 = vunpack.c.l.b16 %v694
        %v739 = vunpack.c.l.b16 %v695
        %v740 = vunpack.c.l.b16 %v696
        %v741 = vunpack.c.l.b16 %v697
        %v742 = vpack.c.b16 %v725, %v724
        %v743 = vpack.c.b16 %v727, %v726
        %v744 = vpack.c.b16 %v729, %v728
        %v745 = vpack.c.b16 %v731, %v730
        %v746 = vpack.c.b16 %v733, %v732
        %v747 = vpack.c.b16 %v735, %v734
        %v748 = vpack.c.b16 %v737, %v736
        %v749 = vpack.c.b16 %v739, %v738
        %v750 = vpack.c.b16 %v741, %v740
        %760 = vmatprep.subr.bf16.mxu0 0
        %761 = vmatpush1.bf16.msra.mxu0 %v742
        %762 = vmatprep.subr.bf16.mxu0 0
        %763 = vmatpush1.bf16.msra.mxu0 %v743
        %764 = vmatprep.subr.bf16.mxu0 0
        %765 = vmatpush1.bf16.msra.mxu0 %v744
        %766 = vmatprep.subr.bf16.mxu0 0
        %767 = vmatpush1.bf16.msra.mxu0 %v745
        %768 = vmatprep.subr.bf16.mxu0 0
        %769 = vmatpush1.bf16.msra.mxu0 %v746
        %770 = vmatprep.subr.bf16.mxu0 0
        %771 = vmatpush1.bf16.msra.mxu0 %v747
        %772 = vmatprep.subr.bf16.mxu0 0
        %773 = vmatpush1.bf16.msra.mxu0 %v748
        %774 = vmatprep.subr.bf16.mxu0 0
        %775 = vmatpush1.bf16.msra.mxu0 %v749
        %776 = vmatprep.subr.bf16.mxu0 0
        %777 = vmatpush1.bf16.msra.mxu0 %v750
        %778 = vmatprep.subr.bf16.mxu0 0
        %779 = vmatpush1.bf16.msra.mxu0 0
        %780 = vmatprep.subr.bf16.mxu0 0
        %781 = vmatpush1.bf16.msra.mxu0 0
        %782 = vmatprep.subr.bf16.mxu0 0
        %783 = vmatpush1.bf16.msra.mxu0 0
        %784 = vmatprep.subr.bf16.mxu0 0
        %785 = vmatpush1.bf16.msra.mxu0 0
        %786 = vmatprep.subr.bf16.mxu0 0
        %787 = vmatpush1.bf16.msra.mxu0 0
        %788 = vmatprep.subr.bf16.mxu0 0
        %789 = vmatpush1.bf16.msra.mxu0 0
        %790 = vmatprep.subr.bf16.mxu0 0
        %791 = vmatpush1.bf16.msra.mxu0 0
        %792 = vmatprep.mubr.bf16.mxu0 %v508
        %793 = vmatmul.mubr.bf16.gmra.mrb[0].mxu0 %v678
        %v794 = vpop.f32.mrb[0].mxu0
        %v795 = vadd.f32 %v704, %v794
        %v796 = vpop.f32.mrb[0].mxu0
        %v797 = vpop.f32.mrb[0].mxu0
        %v798 = vadd.f32 %v704, %v797
        %v799 = vpop.f32.mrb[0].mxu0
        %800 = vdwg.mxu0
        %v801 = vmax.f32 %v795, 0.0
        %v802 = vmax.f32 %v798, 0.0
        %v803 = vpack.c.bf16 %v802, %v801
        %s804 = scalar_lea.vmem [#allocation2], 216
        %v805 = vld [vmem:[%s804] sm:$0xf]
        %v806 = vld [vmem:[%s804 + $0x4] sm:$0xf]
        %v807 = vld [vmem:[%s804 + $0x8] sm:$0xf]
        %v808 = vld [vmem:[%s804 + $0xc] sm:$0xf]
        %v809 = vld [vmem:[%s804 + $0x10] sm:$0xf]
        %v810 = vld [vmem:[%s804 + $0x14] sm:$0xf]
        %v811 = vld [vmem:[%s804 + $0x18] sm:$0xf]
        %v812 = vld [vmem:[%s804 + $0x1c] sm:$0xf]
        %v813 = vld [vmem:[%s804 + $0x20] sm:$0xf]
        %v814 = vld [vmem:[%s804 + $0x24] sm:$0xf]
        %v815 = vld [vmem:[%s804 + $0x28] sm:$0xf]
        %v816 = vld [vmem:[%s804 + $0x2c] sm:$0xf]
        %v817 = vld [vmem:[%s804 + $0x30] sm:$0xf]
        %v818 = vld [vmem:[%s804 + $0x34] sm:$0xf]
        %v819 = vld [vmem:[%s804 + $0x38] sm:$0xf]
        %v820 = vld [vmem:[%s804 + $0x3c] sm:$0xf]
        %v821 = vld [vmem:[%s804 + $0x40] sm:$0xf]
        %v822 = vld [vmem:[%s804 + $0x44] sm:$0xf]
        %s823 = scalar_lea.vmem %s5, 3
        %v824 = vld [vmem:[%s823] sm:$0x1]
        %v826 = vlaneseq
        %v827 = vshrl.u32 %v826, 7
        %v828 = vsub.s32 0, %v827
        %v829 = vrot.slane %v824, %v828
        %v849 = vunpack.c.l.b16 %v805
        %v850 = vunpack.c.l.b16 %v806
        %v851 = vunpack.c.l.b16 %v807
        %v852 = vunpack.c.l.b16 %v808
        %v853 = vunpack.c.l.b16 %v809
        %v854 = vunpack.c.l.b16 %v810
        %v855 = vunpack.c.l.b16 %v811
        %v856 = vunpack.c.l.b16 %v812
        %v857 = vunpack.c.l.b16 %v813
        %v858 = vunpack.c.l.b16 %v814
        %v859 = vunpack.c.l.b16 %v815
        %v860 = vunpack.c.l.b16 %v816
        %v861 = vunpack.c.l.b16 %v817
        %v862 = vunpack.c.l.b16 %v818
        %v863 = vunpack.c.l.b16 %v819
        %v864 = vunpack.c.l.b16 %v820
        %v865 = vunpack.c.l.b16 %v821
        %v866 = vunpack.c.l.b16 %v822
        %v867 = vpack.c.b16 %v850, %v849
        %v868 = vpack.c.b16 %v852, %v851
        %v869 = vpack.c.b16 %v854, %v853
        %v870 = vpack.c.b16 %v856, %v855
        %v871 = vpack.c.b16 %v858, %v857
        %v872 = vpack.c.b16 %v860, %v859
        %v873 = vpack.c.b16 %v862, %v861
        %v874 = vpack.c.b16 %v864, %v863
        %v875 = vpack.c.b16 %v866, %v865
        %885 = vmatprep.subr.bf16.mxu0 0
        %886 = vmatpush1.bf16.msra.mxu0 %v867
        %887 = vmatprep.subr.bf16.mxu0 0
        %888 = vmatpush1.bf16.msra.mxu0 %v868
        %889 = vmatprep.subr.bf16.mxu0 0
        %890 = vmatpush1.bf16.msra.mxu0 %v869
        %891 = vmatprep.subr.bf16.mxu0 0
        %892 = vmatpush1.bf16.msra.mxu0 %v870
        %893 = vmatprep.subr.bf16.mxu0 0
        %894 = vmatpush1.bf16.msra.mxu0 %v871
        %895 = vmatprep.subr.bf16.mxu0 0
        %896 = vmatpush1.bf16.msra.mxu0 %v872
        %897 = vmatprep.subr.bf16.mxu0 0
        %898 = vmatpush1.bf16.msra.mxu0 %v873
        %899 = vmatprep.subr.bf16.mxu0 0
        %900 = vmatpush1.bf16.msra.mxu0 %v874
        %901 = vmatprep.subr.bf16.mxu0 0
        %902 = vmatpush1.bf16.msra.mxu0 %v875
        %903 = vmatprep.subr.bf16.mxu0 0
        %904 = vmatpush1.bf16.msra.mxu0 0
        %905 = vmatprep.subr.bf16.mxu0 0
        %906 = vmatpush1.bf16.msra.mxu0 0
        %907 = vmatprep.subr.bf16.mxu0 0
        %908 = vmatpush1.bf16.msra.mxu0 0
        %909 = vmatprep.subr.bf16.mxu0 0
        %910 = vmatpush1.bf16.msra.mxu0 0
        %911 = vmatprep.subr.bf16.mxu0 0
        %912 = vmatpush1.bf16.msra.mxu0 0
        %913 = vmatprep.subr.bf16.mxu0 0
        %914 = vmatpush1.bf16.msra.mxu0 0
        %915 = vmatprep.subr.bf16.mxu0 0
        %916 = vmatpush1.bf16.msra.mxu0 0
        %917 = vmatprep.mubr.bf16.mxu0 %v508
        %918 = vmatmul.mubr.bf16.gmra.mrb[0].mxu0 %v803
        %v919 = vpop.f32.mrb[0].mxu0
        %v920 = vadd.f32 %v829, %v919
        %v921 = vpop.f32.mrb[0].mxu0
        %v922 = vpop.f32.mrb[0].mxu0
        %v923 = vadd.f32 %v829, %v922
        %v924 = vpop.f32.mrb[0].mxu0
        %925 = vdwg.mxu0
        %v926 = vmax.f32 %v920, 0.0
        %v927 = vmax.f32 %v923, 0.0
        %v928 = vpack.c.bf16 %v927, %v926
        %s929 = scalar_lea.vmem [#allocation2], 288
        %v930 = vld [vmem:[%s929] sm:$0xf]
        %v931 = vld [vmem:[%s929 + $0x4] sm:$0xf]
        %v932 = vld [vmem:[%s929 + $0x8] sm:$0xf]
        %v933 = vld [vmem:[%s929 + $0xc] sm:$0xf]
        %v934 = vld [vmem:[%s929 + $0x10] sm:$0xf]
        %v935 = vld [vmem:[%s929 + $0x14] sm:$0xf]
        %v936 = vld [vmem:[%s929 + $0x18] sm:$0xf]
        %v937 = vld [vmem:[%s929 + $0x1c] sm:$0xf]
        %v938 = vld [vmem:[%s929 + $0x20] sm:$0xf]
        %v939 = vld [vmem:[%s929 + $0x24] sm:$0xf]
        %v940 = vld [vmem:[%s929 + $0x28] sm:$0xf]
        %v941 = vld [vmem:[%s929 + $0x2c] sm:$0xf]
        %v942 = vld [vmem:[%s929 + $0x30] sm:$0xf]
        %v943 = vld [vmem:[%s929 + $0x34] sm:$0xf]
        %v944 = vld [vmem:[%s929 + $0x38] sm:$0xf]
        %v945 = vld [vmem:[%s929 + $0x3c] sm:$0xf]
        %v946 = vld [vmem:[%s929 + $0x40] sm:$0xf]
        %v947 = vld [vmem:[%s929 + $0x44] sm:$0xf]
        %s948 = scalar_lea.vmem %s5, 4
        %v949 = vld [vmem:[%s948] sm:$0x1]
        %v951 = vlaneseq
        %v952 = vshrl.u32 %v951, 7
        %v953 = vsub.s32 0, %v952
        %v954 = vrot.slane %v949, %v953
        %v974 = vunpack.c.l.b16 %v930
        %v975 = vunpack.c.l.b16 %v931
        %v976 = vunpack.c.l.b16 %v932
        %v977 = vunpack.c.l.b16 %v933
        %v978 = vunpack.c.l.b16 %v934
        %v979 = vunpack.c.l.b16 %v935
        %v980 = vunpack.c.l.b16 %v936
        %v981 = vunpack.c.l.b16 %v937
        %v982 = vunpack.c.l.b16 %v938
        %v983 = vunpack.c.l.b16 %v939
        %v984 = vunpack.c.l.b16 %v940
        %v985 = vunpack.c.l.b16 %v941
        %v986 = vunpack.c.l.b16 %v942
        %v987 = vunpack.c.l.b16 %v943
        %v988 = vunpack.c.l.b16 %v944
        %v989 = vunpack.c.l.b16 %v945
        %v990 = vunpack.c.l.b16 %v946
        %v991 = vunpack.c.l.b16 %v947
        %v992 = vpack.c.b16 %v975, %v974
        %v993 = vpack.c.b16 %v977, %v976
        %v994 = vpack.c.b16 %v979, %v978
        %v995 = vpack.c.b16 %v981, %v980
        %v996 = vpack.c.b16 %v983, %v982
        %v997 = vpack.c.b16 %v985, %v984
        %v998 = vpack.c.b16 %v987, %v986
        %v999 = vpack.c.b16 %v989, %v988
        %v1000 = vpack.c.b16 %v991, %v990
        %1010 = vmatprep.subr.bf16.mxu0 0
        %1011 = vmatpush1.bf16.msra.mxu0 %v992
        %1012 = vmatprep.subr.bf16.mxu0 0
        %1013 = vmatpush1.bf16.msra.mxu0 %v993
        %1014 = vmatprep.subr.bf16.mxu0 0
        %1015 = vmatpush1.bf16.msra.mxu0 %v994
        %1016 = vmatprep.subr.bf16.mxu0 0
        %1017 = vmatpush1.bf16.msra.mxu0 %v995
        %1018 = vmatprep.subr.bf16.mxu0 0
        %1019 = vmatpush1.bf16.msra.mxu0 %v996
        %1020 = vmatprep.subr.bf16.mxu0 0
        %1021 = vmatpush1.bf16.msra.mxu0 %v997
        %1022 = vmatprep.subr.bf16.mxu0 0
        %1023 = vmatpush1.bf16.msra.mxu0 %v998
        %1024 = vmatprep.subr.bf16.mxu0 0
        %1025 = vmatpush1.bf16.msra.mxu0 %v999
        %1026 = vmatprep.subr.bf16.mxu0 0
        %1027 = vmatpush1.bf16.msra.mxu0 %v1000
        %1028 = vmatprep.subr.bf16.mxu0 0
        %1029 = vmatpush1.bf16.msra.mxu0 0
        %1030 = vmatprep.subr.bf16.mxu0 0
        %1031 = vmatpush1.bf16.msra.mxu0 0
        %1032 = vmatprep.subr.bf16.mxu0 0
        %1033 = vmatpush1.bf16.msra.mxu0 0
        %1034 = vmatprep.subr.bf16.mxu0 0
        %1035 = vmatpush1.bf16.msra.mxu0 0
        %1036 = vmatprep.subr.bf16.mxu0 0
        %1037 = vmatpush1.bf16.msra.mxu0 0
        %1038 = vmatprep.subr.bf16.mxu0 0
        %1039 = vmatpush1.bf16.msra.mxu0 0
        %1040 = vmatprep.subr.bf16.mxu0 0
        %1041 = vmatpush1.bf16.msra.mxu0 0
        %1042 = vmatprep.mubr.bf16.mxu0 %v508
        %1043 = vmatmul.mubr.bf16.gmra.mrb[0].mxu0 %v928
        %v1044 = vpop.f32.mrb[0].mxu0
        %v1045 = vadd.f32 %v954, %v1044
        %v1046 = vpop.f32.mrb[0].mxu0
        %v1047 = vpop.f32.mrb[0].mxu0
        %v1048 = vadd.f32 %v954, %v1047
        %v1049 = vpop.f32.mrb[0].mxu0
        %1050 = vdwg.mxu0
        %v1051 = vmax.f32 %v1045, 0.0
        %v1052 = vmax.f32 %v1048, 0.0
        %v1053 = vpack.c.bf16 %v1052, %v1051
        %v1054 = vld [vmem:[%s6] sm:$0xf]
        %v1055 = vld [vmem:[%s6 + $0x4] sm:$0xf]
        %v1056 = vld [vmem:[%s6 + $0x8] sm:$0xf]
        %v1057 = vld [vmem:[%s6 + $0xc] sm:$0xf]
        %v1058 = vld [vmem:[%s6 + $0x10] sm:$0xf]
        %v1059 = vld [vmem:[%s6 + $0x14] sm:$0xf]
        %v1060 = vld [vmem:[%s6 + $0x18] sm:$0xf]
        %v1061 = vld [vmem:[%s6 + $0x1c] sm:$0xf]
        %v1062 = vld [vmem:[%s6 + $0x20] sm:$0xf]
        %v1063 = vld [vmem:[%s6 + $0x24] sm:$0xf]
        %v1064 = vld [vmem:[%s6 + $0x28] sm:$0xf]
        %v1065 = vld [vmem:[%s6 + $0x2c] sm:$0xf]
        %v1066 = vld [vmem:[%s6 + $0x30] sm:$0xf]
        %v1067 = vld [vmem:[%s6 + $0x34] sm:$0xf]
        %v1068 = vld [vmem:[%s6 + $0x38] sm:$0xf]
        %v1069 = vld [vmem:[%s6 + $0x3c] sm:$0xf]
        %v1070 = vld [vmem:[%s6 + $0x40] sm:$0xf]
        %v1071 = vld [vmem:[%s6 + $0x44] sm:$0xf]
        %v1072 = vld [vmem:[%s7] sm:$0x1]
        %v1074 = vlaneseq
        %v1075 = vshrl.u32 %v1074, 7
        %v1076 = vsub.s32 0, %v1075
        %v1077 = vrot.slane %v1072, %v1076
        %v1097 = vunpack.c.l.b16 %v1054
        %v1098 = vunpack.c.l.b16 %v1055
        %v1099 = vunpack.c.l.b16 %v1056
        %v1100 = vunpack.c.l.b16 %v1057
        %v1101 = vunpack.c.l.b16 %v1058
        %v1102 = vunpack.c.l.b16 %v1059
        %v1103 = vunpack.c.l.b16 %v1060
        %v1104 = vunpack.c.l.b16 %v1061
        %v1105 = vunpack.c.l.b16 %v1062
        %v1106 = vunpack.c.l.b16 %v1063
        %v1107 = vunpack.c.l.b16 %v1064
        %v1108 = vunpack.c.l.b16 %v1065
        %v1109 = vunpack.c.l.b16 %v1066
        %v1110 = vunpack.c.l.b16 %v1067
        %v1111 = vunpack.c.l.b16 %v1068
        %v1112 = vunpack.c.l.b16 %v1069
        %v1113 = vunpack.c.l.b16 %v1070
        %v1114 = vunpack.c.l.b16 %v1071
        %v1115 = vpack.c.b16 %v1098, %v1097
        %v1116 = vpack.c.b16 %v1100, %v1099
        %v1117 = vpack.c.b16 %v1102, %v1101
        %v1118 = vpack.c.b16 %v1104, %v1103
        %v1119 = vpack.c.b16 %v1106, %v1105
        %v1120 = vpack.c.b16 %v1108, %v1107
        %v1121 = vpack.c.b16 %v1110, %v1109
        %v1122 = vpack.c.b16 %v1112, %v1111
        %v1123 = vpack.c.b16 %v1114, %v1113
        %1133 = vmatprep.subr.bf16.mxu0 0
        %1134 = vmatpush1.bf16.msra.mxu0 %v1115
        %1135 = vmatprep.subr.bf16.mxu0 0
        %1136 = vmatpush1.bf16.msra.mxu0 %v1116
        %1137 = vmatprep.subr.bf16.mxu0 0
        %1138 = vmatpush1.bf16.msra.mxu0 %v1117
        %1139 = vmatprep.subr.bf16.mxu0 0
        %1140 = vmatpush1.bf16.msra.mxu0 %v1118
        %1141 = vmatprep.subr.bf16.mxu0 0
        %1142 = vmatpush1.bf16.msra.mxu0 %v1119
        %1143 = vmatprep.subr.bf16.mxu0 0
        %1144 = vmatpush1.bf16.msra.mxu0 %v1120
        %1145 = vmatprep.subr.bf16.mxu0 0
        %1146 = vmatpush1.bf16.msra.mxu0 %v1121
        %1147 = vmatprep.subr.bf16.mxu0 0
        %1148 = vmatpush1.bf16.msra.mxu0 %v1122
        %1149 = vmatprep.subr.bf16.mxu0 0
        %1150 = vmatpush1.bf16.msra.mxu0 %v1123
        %1151 = vmatprep.subr.bf16.mxu0 0
        %1152 = vmatpush1.bf16.msra.mxu0 0
        %1153 = vmatprep.subr.bf16.mxu0 0
        %1154 = vmatpush1.bf16.msra.mxu0 0
        %1155 = vmatprep.subr.bf16.mxu0 0
        %1156 = vmatpush1.bf16.msra.mxu0 0
        %1157 = vmatprep.subr.bf16.mxu0 0
        %1158 = vmatpush1.bf16.msra.mxu0 0
        %1159 = vmatprep.subr.bf16.mxu0 0
        %1160 = vmatpush1.bf16.msra.mxu0 0
        %1161 = vmatprep.subr.bf16.mxu0 0
        %1162 = vmatpush1.bf16.msra.mxu0 0
        %1163 = vmatprep.subr.bf16.mxu0 0
        %1164 = vmatpush1.bf16.msra.mxu0 0
        %1165 = vmatprep.mubr.bf16.mxu0 %v508
        %1166 = vmatmul.mubr.bf16.gmra.mrb[0].mxu0 %v1053
        %v1167 = vpop.f32.mrb[0].mxu0
        %v1168 = vadd.f32 %v1077, %v1167
        %v1169 = vpop.f32.mrb[0].mxu0
        %v1170 = vpop.f32.mrb[0].mxu0
        %v1171 = vadd.f32 %v1077, %v1170
        %v1172 = vpop.f32.mrb[0].mxu0
        %1173 = vdwg.mxu0
        %1174 = vst.msk [vmem:[%s344] sm:$0xff] %vm507, %v1168
        %1175 = vst.msk [vmem:[%s344 + $0x8] sm:$0xff] %vm507, %v1171
        %s1176 = smul.u32 2, %s20
        %p1177 = scmp.lt.s32.totalorder %s1176, 5
        %s1178 = scalar_select %p1177, %s1176, 5
        %s1179 = smul.addr %s1178, 8
        %s1180 = scalar_lea.vmem %s8, %s1179
        // Predicated region
        $region57: #{tpu_custom_call.1} parent=51 // pred_check
          %p1181 = pneg %p216
        $region58: #{tpu_custom_call.1} parent=51 // pred_check_branch
          %1183 = sbr.rel (%p1181) target = $region60
        $region59: #{tpu_custom_call.1} parent=51 // pred_region
          %s1184 = smul.u32 2, %s20
        $region60: #{tpu_custom_call.1} parent=51 // pred_fallthru
          _
      $region52: #{tpu_custom_call.1} parent=5 // pred_fallthru
        _
      %p1185 = scmp.le.s32.totalorder 2, %s15
      // Predicated region
      $region61: #{tpu_custom_call.1} parent=5 // pred_check
        %p1186 = pneg %p1185
      $region62: #{tpu_custom_call.1} parent=5 // pred_check_branch
        %1188 = sbr.rel (%p1186) target = $region64
      $region63: #{tpu_custom_call.1} parent=5 // pred_region
        %s1189 = ssub.s32 %s15, 2
        // Predicated region
        $region65: #{tpu_custom_call.1} parent=63 // pred_check
          %p1190 = pneg %p222
        $region66: #{tpu_custom_call.1} parent=63 // pred_check_branch
          %1192 = sbr.rel (%p1190) target = $region68
        $region67: #{tpu_custom_call.1} parent=63 // pred_region
          %s1193 = smul.u32 2, %s21
          %p1194 = scmp.lt.s32.totalorder %s1193, 5
          %s1195 = scalar_select %p1194, %s1193, 5
          %s1196 = smul.addr %s1195, 8
          %s1197 = scalar_lea.vmem %s8, %s1196
        $region68: #{tpu_custom_call.1} parent=63 // pred_fallthru
          _
      $region64: #{tpu_custom_call.1} parent=5 // pred_fallthru
        _
    $region6: #{tpu_custom_call.1} parent=1 // loop_footer
      %s19 = sadd.s32 1, %s15
    $region7: #{tpu_custom_call.1} parent=1 // loop_footer_branch
      %14 = sbr.rel target = $region3
    $region8: #{tpu_custom_call.1} parent=1 // loop_exit
      _
    %1198 = vsyncpa [#allocation3], 1
    %s1199 = scalar_lea.sflag [#allocation3], 1
    %1200 = vsyncpa %s1199, 1

</llo_original>
